<compile_context>
chip_gen: v7x
topology: tpu7x:2x2x1
jax: 0.10.0
libtpu: 0.0.40
codegen_flags: <defaults>
</compile_context>

<pallas_src>
import math

import numpy as np
import jax
import jax.numpy as jnp
from jax.experimental import pallas as pl
from jax.experimental.pallas import tpu as pltpu

# ----------------------- small synthetic configuration -----------------------
B, T = 2, 2                   # videos, frames per video
C, H, W = 3, 16, 16           # NCHW frame
VIS_DIM = 64                  # clip_model.visual.output_dim
CTX_DIM = 64                  # text transformer width (ln_final.weight.shape[0])
EMBED_DIM = 64                # text_projection output dim
N_HEADS = 4
HEAD_DIM = CTX_DIM // N_HEADS
N_LAYERS = 2
SEQ_LEN = 16                  # stand-in for CLIP's 77-token context
N_CTX_PRE = 2
N_CTX_POST = 2
NAME_LEN = 3
N_CLS = 3
MLP_DIM = 4 * CTX_DIM
META_HID = VIS_DIM // 16
DTYPE = jnp.float32           # residual / accumulation dtype
WDTYPE = jnp.bfloat16         # MXU operand dtype

VMEM_SPEC = pl.BlockSpec(memory_space=pltpu.MemorySpace.VMEM)
SMEM_SPEC = pl.BlockSpec(memory_space=pltpu.MemorySpace.SMEM)
COMPILER_PARAMS = pltpu.CompilerParams(vmem_limit_bytes=32 * 1024 * 1024)


# --------------------- kernel 1: video encoder + meta-net --------------------
def _video_meta_kernel(img_ref, w_img_ref, b_img_ref, w1_ref, b1_ref, w2_ref, b2_ref,
                       vid_ref, imf_ref, bias_ref):
    # TODO(synk): pretrained CLIP ViT visual encoder replaced by a single linear
    # pixel projection stand-in (no checkpoint available in-script).
    # img_ref: (B, T, C*H*W) bf16.  Temporal mean FIRST (exact by linearity of the
    # stand-in projection), then one (B, F) x (F, VIS_DIM) matmul, L2 norm, meta MLP.
    frames = img_ref[...].astype(jnp.float32)                       # (B, T, F)
    mean_frame = jnp.mean(frames, axis=1)                           # 'mean' temporal pooling
    vid = jnp.dot(mean_frame.astype(WDTYPE), w_img_ref[...],
                  preferred_element_type=jnp.float32) + b_img_ref[...]
    vid_ref[...] = vid.astype(vid_ref.dtype)                        # un-normalized video feature

    inv = jax.lax.rsqrt(jnp.sum(vid * vid, axis=-1, keepdims=True) + 1e-12)
    imf = vid * inv                                                  # L2 normalized
    imf_ref[...] = imf.astype(imf_ref.dtype)

    # meta_net: Linear(vis, vis//16) -> ReLU -> Linear(vis//16, ctx_dim)
    hdn = jnp.dot(imf.astype(WDTYPE), w1_ref[...],
                  preferred_element_type=jnp.float32) + b1_ref[...]
    hdn = jnp.maximum(hdn, 0.0)
    bias = jnp.dot(hdn.astype(WDTYPE), w2_ref[...],
                   preferred_element_type=jnp.float32) + b2_ref[...]
    bias_ref[...] = bias.astype(bias_ref.dtype)


def video_and_meta(image, params):
    Bv, Tv = image.shape[:2]
    frame_elems = int(np.prod(image.shape[2:]))
    flat = image.reshape(Bv, Tv, frame_elems).astype(WDTYPE)         # bf16 halves image DMA
    vid, imf, bias = pl.pallas_call(
        _video_meta_kernel,
        out_shape=(jax.ShapeDtypeStruct((Bv, VIS_DIM), DTYPE),
                   jax.ShapeDtypeStruct((Bv, VIS_DIM), DTYPE),
                   jax.ShapeDtypeStruct((Bv, CTX_DIM), DTYPE)),
        in_specs=[VMEM_SPEC] * 7,
        out_specs=(VMEM_SPEC, VMEM_SPEC, VMEM_SPEC),
        compiler_params=COMPILER_PARAMS,
    )(flat, params["w_img"], params["b_img"], params["meta_w1"], params["meta_b1"],
      params["meta_w2"], params["meta_b2"])
    return vid, imf, bias


# ------------- kernel 2: fused text encoder + cosine logits + softmax --------
def _text_logits_kernel(base_ref, ctxm_ref, bias_ref, imf_ref, mask_ref, eot_ref,
                        sel_ref, ls_ref,
                        w_qkv_ref, b_qkv_ref, w_o_ref, b_o_ref,
                        w_fc_ref, b_fc_ref, w_proj_ref, b_proj_ref,
                        lnf_g_ref, lnf_b_ref, tproj_ref,
                        tf_ref, logits_ref):
    n_cls, S, D = base_ref.shape
    b_sz = bias_ref.shape[0]
    n_heads = sel_ref.shape[0]
    n_layers = w_qkv_ref.shape[0]
    BN = b_sz * n_cls
    R = BN * S
    scale = 1.0 / math.sqrt(D // n_heads)

    def ln_normalize(h):
        # affine (gamma/beta) of ln_1 / ln_2 is pre-folded into the following matmul
        mu = jnp.mean(h, axis=-1, keepdims=True)
        xc = h - mu
        var = jnp.mean(xc * xc, axis=-1, keepdims=True)
        return xc * jax.lax.rsqrt(var + 1e-5)

    # ---- in-VMEM prompt assembly: class-shared base(+pos) + per-video ctx bias ----
    base = base_ref[...].astype(jnp.float32)[None]                       # (1,n_cls,S,D)
    shift = bias_ref[...][:, None, None, :] * ctxm_ref[...][None, None]  # (B,1,S,D)
    x2 = (base + shift).reshape(R, D)                                    # rows: (b,c,s)

    mask = mask_ref[...]                                                 # (S,S) causal
    sel4 = sel_ref[...][:, None]                                         # (H,1,1,D) head lane masks

    for l in range(n_layers):
        # ---------------- attention (fused QKV matmul, batched heads) ----------------
        h = ln_normalize(x2).astype(WDTYPE)
        qkv = jnp.dot(h, w_qkv_ref[l], preferred_element_type=jnp.float32) + b_qkv_ref[l]
        q = qkv[:, :D].reshape(BN, S, D)
        k = qkv[:, D:2 * D].reshape(BN, S, D)
        v = qkv[:, 2 * D:].reshape(BN, S, D)

        # head-masked K/V (each head's lanes only) + broadcast Q; lanes stay at D.
        kh = (k[None] * sel4).astype(WDTYPE).reshape(n_heads * BN, S, D)
        vh = (v[None] * sel4).astype(WDTYPE).reshape(n_heads * BN, S, D)
        qh = jnp.broadcast_to(q.astype(WDTYPE)[None],
                              (n_heads, BN, S, D)).reshape(n_heads * BN, S, D)

        s = jnp.einsum('zqd,zkd->zqk', qh, kh,
                       preferred_element_type=jnp.float32) * scale + mask[None]
        s = s - jnp.max(s, axis=-1, keepdims=True)
        p = jnp.exp(s)
        p = p * pl.reciprocal(jnp.sum(p, axis=-1, keepdims=True), approx=True)
        attn = jnp.einsum('zqk,zkd->zqd', p.astype(WDTYPE), vh,
                          preferred_element_type=jnp.float32)
        attn = jnp.sum(attn.reshape(n_heads, R, D), axis=0)   # sum over heads == concat

        x2 = x2 + jnp.dot(attn.astype(WDTYPE), w_o_ref[l],
                          preferred_element_type=jnp.float32) + b_o_ref[l]

        # ---------------- MLP block (QuickGELU) ----------------
        m = jnp.dot(ln_normalize(x2).astype(WDTYPE), w_fc_ref[l],
                    preferred_element_type=jnp.float32) + b_fc_ref[l]
        m = m * jax.nn.sigmoid(1.702 * m)
        x2 = x2 + jnp.dot(m.astype(WDTYPE), w_proj_ref[l],
                          preferred_element_type=jnp.float32) + b_proj_ref[l]

    # ---- ln_final -> text_projection (on all rows) -> EOT pooling -> L2 norm ----
    xf = ln_normalize(x2) * lnf_g_ref[...] + lnf_b_ref[...]
    proj = jnp.dot(xf.astype(WDTYPE), tproj_ref[...],
                   preferred_element_type=jnp.float32)                   # (R, EMB)
    pooled = jnp.sum(proj.reshape(b_sz, n_cls, S, -1) * eot_ref[...][None], axis=2)
    tfn = pooled * jax.lax.rsqrt(jnp.sum(pooled * pooled, axis=-1, keepdims=True) + 1e-12)
    tf_ref[...] = tfn.astype(tf_ref.dtype)                               # (B, n_cls, EMB)

    # ---- cosine logits per video + exact softmax over classes ----
    ls = ls_ref[0]                                                       # SMEM scalar (exp'd)
    sim = ls * jnp.sum(imf_ref[...][:, None, :] * tfn, axis=-1)          # (B, n_cls)
    sim = sim - jnp.max(sim, axis=-1, keepdims=True)
    e = jnp.exp(sim)
    logits_ref[...] = (e / jnp.sum(e, axis=-1, keepdims=True)).astype(logits_ref.dtype)


def text_encoder_logits(base_pos, meta_bias, imf_norm, eot_onehot, ls_exp, params):
    Bv = meta_bias.shape[0]
    args = (base_pos, params["ctx_mask"], meta_bias, imf_norm, params["causal_mask"],
            eot_onehot, params["head_sel"], ls_exp,
            params["w_qkv"], params["b_qkv"], params["w_o"], params["b_o"],
            params["w_fc"], params["b_fc"], params["w_proj"], params["b_proj"],
            params["lnf_g"], params["lnf_b"], params["text_projection"])
    in_specs = [VMEM_SPEC] * 7 + [SMEM_SPEC] + [VMEM_SPEC] * 11
    tf_all, logits = pl.pallas_call(
        _text_logits_kernel,
        out_shape=(jax.ShapeDtypeStruct((Bv, N_CLS, EMBED_DIM), DTYPE),
                   jax.ShapeDtypeStruct((Bv, N_CLS), DTYPE)),
        in_specs=in_specs,
        out_specs=(VMEM_SPEC, VMEM_SPEC),
        compiler_params=COMPILER_PARAMS,
    )(*args)
    return tf_all, logits


# ------------------- class-shared prompt base (tiny XLA prep) -----------------
def build_base_prompt(params):
    # prefix | ctx_pre | class tokens | ctx_post | suffix   (+ positional embedding)
    b_pre = jnp.broadcast_to(params["ctx_pre"][None], (N_CLS, N_CTX_PRE, CTX_DIM))
    b_post = jnp.broadcast_to(params["ctx_post"][None], (N_CLS, N_CTX_POST, CTX_DIM))
    base = jnp.concatenate([params["token_prefix"], b_pre, params["token_cls"],
                            b_post, params["token_suffix"]], axis=1)      # (n_cls,S,D)
    return (base + params["pos_emb"][None]).astype(WDTYPE)


# --------------------------------- forward -----------------------------------
def tba_clip_forward(image, params):
    # config.TRAIN.LP == 1 branch; TEMPORAL_POOLING == 'mean' -> attention_format is None
    image_features, image_feature, meta_bias = video_and_meta(image, params)
    base_pos = build_base_prompt(params)                                  # (n_cls,S,D) bf16
    eot_onehot = jax.nn.one_hot(
        jnp.argmax(params["tokenized_prompts"], axis=-1), SEQ_LEN, dtype=DTYPE)[:, :, None]
    ls_exp = jnp.exp(params["logit_scale"])                               # clip logit_scale.exp()
    text_features_all, logits = text_encoder_logits(base_pos, meta_bias, image_feature,
                                                    eot_onehot, ls_exp, params)
    text_features = text_features_all[-1]   # PyTorch keeps the last loop iteration's value
    return logits, image_features, text_features, None


# ------------------------------ parameter setup -------------------------------
def init_params(key):
    keys = iter(jax.random.split(key, 32))

    def nrm(shape, std=0.02):
        return (jax.random.normal(next(keys), shape) * std).astype(jnp.float32)

    D = CTX_DIM
    params = {
        "w_img": nrm((C * H * W, VIS_DIM), std=1.0 / math.sqrt(C * H * W)).astype(WDTYPE),
        "b_img": jnp.zeros((1, VIS_DIM), DTYPE),
        "ctx_pre": nrm((N_CTX_PRE, D)),
        "ctx_post": nrm((N_CTX_POST, D)),
        "meta_w1": nrm((VIS_DIM, META_HID), std=1.0 / math.sqrt(VIS_DIM)).astype(WDTYPE),
        "meta_b1": jnp.zeros((1, META_HID), DTYPE),
        "meta_w2": nrm((META_HID, D), std=1.0 / math.sqrt(META_HID)).astype(WDTYPE),
        "meta_b2": jnp.zeros((1, D), DTYPE),
        "pos_emb": nrm((SEQ_LEN, D)),
        "lnf_g": jnp.ones((1, D), DTYPE),
        "lnf_b": jnp.zeros((1, D), DTYPE),
        "text_projection": nrm((D, EMBED_DIM), std=1.0 / math.sqrt(D)).astype(WDTYPE),
        "logit_scale": jnp.full((1,), float(np.log(1.0 / 0.07)), DTYPE),
    }

    # ---- transformer layer weights: fuse QKV, fold ln_1/ln_2 affine into matmuls ----
    w_qkv_raw = nrm((N_LAYERS, D, 3 * D), std=1.0 / math.sqrt(D))
    b_qkv_raw = jnp.zeros((N_LAYERS, 3 * D), jnp.float32)
    ln1_g = 1.0 + nrm((N_LAYERS, D), std=0.05)
    ln1_b = nrm((N_LAYERS, D), std=0.05)
    params["w_qkv"] = (ln1_g[:, :, None] * w_qkv_raw).astype(WDTYPE)
    params["b_qkv"] = (jnp.einsum("ld,ldn->ln", ln1_b, w_qkv_raw)
                       + b_qkv_raw)[:, None, :].astype(DTYPE)

    params["w_o"] = nrm((N_LAYERS, D, D), std=1.0 / math.sqrt(D)).astype(WDTYPE)
    params["b_o"] = jnp.zeros((N_LAYERS, 1, D), DTYPE)

    w_fc_raw = nrm((N_LAYERS, D, MLP_DIM), std=1.0 / math.sqrt(D))
    b_fc_raw = jnp.zeros((N_LAYERS, MLP_DIM), jnp.float32)
    ln2_g = 1.0 + nrm((N_LAYERS, D), std=0.05)
    ln2_b = nrm((N_LAYERS, D), std=0.05)
    params["w_fc"] = (ln2_g[:, :, None] * w_fc_raw).astype(WDTYPE)
    params["b_fc"] = (jnp.einsum("ld,ldn->ln", ln2_b, w_fc_raw)
                      + b_fc_raw)[:, None, :].astype(DTYPE)

    params["w_proj"] = nrm((N_LAYERS, MLP_DIM, D), std=1.0 / math.sqrt(MLP_DIM)).astype(WDTYPE)
    params["b_proj"] = jnp.zeros((N_LAYERS, 1, D), DTYPE)

    # TODO(synk): CLIP BPE tokenizer replaced by synthetic token ids; EOT is the
    # largest id so tokenized_prompts.argmax(-1) picks the EOT position as in CLIP.
    VOCAB = 64
    SOT, CTX_TOK, EOT = 1, 10, VOCAB - 1
    toks = np.zeros((N_CLS, SEQ_LEN), dtype=np.int32)
    for c in range(N_CLS):
        row = ([SOT] + [CTX_TOK] * N_CTX_PRE + [20 + c, 30 + c, 40 + c][:NAME_LEN]
               + [CTX_TOK] * N_CTX_POST + [EOT])
        toks[c, :len(row)] = row
    tokenized_prompts = jnp.asarray(toks)
    token_table = nrm((VOCAB, D))
    embedding = token_table[tokenized_prompts]                 # (n_cls, S, D)

    params["tokenized_prompts"] = tokenized_prompts
    params["token_prefix"] = embedding[:, :1, :]               # SOT
    params["token_cls"] = embedding[:, 1 + N_CTX_PRE:-1 - N_CTX_POST, :]
    params["token_suffix"] = embedding[:, -1:, :]

    # 1.0 at the learned-context positions (where the meta-net bias is added)
    ctxm = np.zeros((SEQ_LEN, 1), np.float32)
    ctxm[1:1 + N_CTX_PRE] = 1.0
    ctxm[SEQ_LEN - 1 - N_CTX_POST:SEQ_LEN - 1] = 1.0
    params["ctx_mask"] = jnp.asarray(ctxm)

    params["causal_mask"] = jnp.triu(
        jnp.full((SEQ_LEN, SEQ_LEN), -1e9, dtype=jnp.float32), k=1)

    # per-head lane masks (keep attention lane-dense at D instead of 16-wide slices)
    sel = np.zeros((N_HEADS, 1, D), np.float32)
    for hh in range(N_HEADS):
        sel[hh, 0, hh * HEAD_DIM:(hh + 1) * HEAD_DIM] = 1.0
    params["head_sel"] = jnp.asarray(sel)
    return params


# ------------------------------------ main ------------------------------------
if __name__ == "__main__":
    key = jax.random.PRNGKey(0)
    pkey, xkey = jax.random.split(key)
    params = init_params(pkey)
    image = jax.random.normal(xkey, (B, T, C, H, W), dtype=DTYPE)   # video, NCHW frames

    logits, image_features, text_features, aff = tba_clip_forward(image, params)
    jax.block_until_ready((logits, image_features, text_features))

    assert logits.shape == (B, N_CLS)
    assert image_features.shape == (B, VIS_DIM)
    assert text_features.shape == (N_CLS, EMBED_DIM)
    assert aff is None
    assert bool(jnp.all(jnp.isfinite(logits)))
    # each row of logits is a softmax distribution over classes
    assert bool(jnp.allclose(jnp.sum(logits, axis=-1), 1.0, atol=1e-4))
    print("KERNEL_OK")
</pallas_src>

<mosaic_0001>
module attributes {stable_mosaic.version = 11 : i64} {
  func.func @_video_meta_kernel(%arg0: memref<2x2x768xbf16, #tpu.memory_space<vmem>>, %arg1: memref<768x64xbf16, #tpu.memory_space<vmem>>, %arg2: memref<1x64xf32, #tpu.memory_space<vmem>>, %arg3: memref<64x4xbf16, #tpu.memory_space<vmem>>, %arg4: memref<1x4xf32, #tpu.memory_space<vmem>>, %arg5: memref<4x64xbf16, #tpu.memory_space<vmem>>, %arg6: memref<1x64xf32, #tpu.memory_space<vmem>>, %arg7: memref<2x64xf32, #tpu.memory_space<vmem>>, %arg8: memref<2x64xf32, #tpu.memory_space<vmem>>, %arg9: memref<2x64xf32, #tpu.memory_space<vmem>>) attributes {dimension_semantics = [], scalar_prefetch = 0 : i64, scratch_operands = 0 : i64, tpu.core_type = #tpu.core_type<tc>} {
    %c0 = arith.constant 0 : index
    %c0_0 = arith.constant 0 : index
    %c0_1 = arith.constant 0 : index
    %0 = vector.load %arg0[%c0, %c0_0, %c0_1] : memref<2x2x768xbf16, #tpu.memory_space<vmem>>, vector<2x2x768xbf16>
    %1 = arith.extf %0 : vector<2x2x768xbf16> to vector<2x2x768xf32>
    %cst = arith.constant dense<0.000000e+00> : vector<2x768xf32>
    %2 = vector.multi_reduction <add>, %1, %cst [1] : vector<2x2x768xf32> to vector<2x768xf32>
    %cst_2 = arith.constant 2.000000e+00 : f32
    %3 = vector.broadcast %cst_2 : f32 to vector<2x768xf32>
    %4 = arith.divf %2, %3 : vector<2x768xf32>
    %5 = arith.truncf %4 : vector<2x768xf32> to vector<2x768xbf16>
    %c0_3 = arith.constant 0 : index
    %c0_4 = arith.constant 0 : index
    %6 = vector.load %arg1[%c0_3, %c0_4] : memref<768x64xbf16, #tpu.memory_space<vmem>>, vector<768x64xbf16>
    %cst_5 = arith.constant dense<0.000000e+00> : vector<2x64xf32>
    %7 = tpu.matmul %5, %6, %cst_5 {dimension_numbers = #tpu.dot_dimension_numbers<[1], [0], [0], [1], [0, 0, 1, 1], [], []>} : vector<2x768xbf16>, vector<768x64xbf16>, vector<2x64xf32> -> vector<2x64xf32>
    %c0_6 = arith.constant 0 : index
    %c0_7 = arith.constant 0 : index
    %8 = vector.load %arg2[%c0_6, %c0_7] : memref<1x64xf32, #tpu.memory_space<vmem>>, vector<1x64xf32>
    %9 = vector.broadcast %8 : vector<1x64xf32> to vector<2x64xf32>
    %10 = arith.addf %7, %9 : vector<2x64xf32>
    %c0_8 = arith.constant 0 : index
    %c0_9 = arith.constant 0 : index
    %11 = vector.load %arg7[%c0_8, %c0_9] : memref<2x64xf32, #tpu.memory_space<vmem>>, vector<2x64xf32>
    tpu.vector_store %arg7[%c0_8, %c0_9], %10 {strides = array<i32>} : memref<2x64xf32, #tpu.memory_space<vmem>>, vector<2x64xf32>,
    %12 = arith.mulf %10, %10 : vector<2x64xf32>
    %cst_10 = arith.constant dense<0.000000e+00> : vector<2xf32>
    %13 = vector.multi_reduction <add>, %12, %cst_10 [1] : vector<2x64xf32> to vector<2xf32>
    %14 = vector.shape_cast %13 : vector<2xf32> to vector<2x1xf32>
    %cst_11 = arith.constant 9.99999996E-13 : f32
    %15 = vector.broadcast %cst_11 : f32 to vector<2x1xf32>
    %16 = arith.addf %14, %15 : vector<2x1xf32>
    %17 = math.rsqrt %16 : vector<2x1xf32>
    %18 = vector.broadcast %17 : vector<2x1xf32> to vector<2x64xf32>
    %19 = arith.mulf %10, %18 : vector<2x64xf32>
    %c0_12 = arith.constant 0 : index
    %c0_13 = arith.constant 0 : index
    %20 = vector.load %arg8[%c0_12, %c0_13] : memref<2x64xf32, #tpu.memory_space<vmem>>, vector<2x64xf32>
    tpu.vector_store %arg8[%c0_12, %c0_13], %19 {strides = array<i32>} : memref<2x64xf32, #tpu.memory_space<vmem>>, vector<2x64xf32>,
    %21 = arith.truncf %19 : vector<2x64xf32> to vector<2x64xbf16>
    %c0_14 = arith.constant 0 : index
    %c0_15 = arith.constant 0 : index
    %22 = vector.load %arg3[%c0_14, %c0_15] : memref<64x4xbf16, #tpu.memory_space<vmem>>, vector<64x4xbf16>
    %cst_16 = arith.constant dense<0.000000e+00> : vector<2x4xf32>
    %23 = tpu.matmul %21, %22, %cst_16 {dimension_numbers = #tpu.dot_dimension_numbers<[1], [0], [0], [1], [0, 0, 1, 1], [], []>} : vector<2x64xbf16>, vector<64x4xbf16>, vector<2x4xf32> -> vector<2x4xf32>
    %c0_17 = arith.constant 0 : index
    %c0_18 = arith.constant 0 : index
    %24 = vector.load %arg4[%c0_17, %c0_18] : memref<1x4xf32, #tpu.memory_space<vmem>>, vector<1x4xf32>
    %25 = vector.broadcast %24 : vector<1x4xf32> to vector<2x4xf32>
    %26 = arith.addf %23, %25 : vector<2x4xf32>
    %cst_19 = arith.constant 0.000000e+00 : f32
    %27 = vector.broadcast %cst_19 : f32 to vector<2x4xf32>
    %28 = arith.maximumf %26, %27 : vector<2x4xf32>
    %29 = arith.truncf %28 : vector<2x4xf32> to vector<2x4xbf16>
    %c0_20 = arith.constant 0 : index
    %c0_21 = arith.constant 0 : index
    %30 = vector.load %arg5[%c0_20, %c0_21] : memref<4x64xbf16, #tpu.memory_space<vmem>>, vector<4x64xbf16>
    %cst_22 = arith.constant dense<0.000000e+00> : vector<2x64xf32>
    %31 = tpu.matmul %29, %30, %cst_22 {dimension_numbers = #tpu.dot_dimension_numbers<[1], [0], [0], [1], [0, 0, 1, 1], [], []>} : vector<2x4xbf16>, vector<4x64xbf16>, vector<2x64xf32> -> vector<2x64xf32>
    %c0_23 = arith.constant 0 : index
    %c0_24 = arith.constant 0 : index
    %32 = vector.load %arg6[%c0_23, %c0_24] : memref<1x64xf32, #tpu.memory_space<vmem>>, vector<1x64xf32>
    %33 = vector.broadcast %32 : vector<1x64xf32> to vector<2x64xf32>
    %34 = arith.addf %31, %33 : vector<2x64xf32>
    %c0_25 = arith.constant 0 : index
    %c0_26 = arith.constant 0 : index
    %35 = vector.load %arg9[%c0_25, %c0_26] : memref<2x64xf32, #tpu.memory_space<vmem>>, vector<2x64xf32>
    tpu.vector_store %arg9[%c0_25, %c0_26], %34 {strides = array<i32>} : memref<2x64xf32, #tpu.memory_space<vmem>>, vector<2x64xf32>,
    return
  }
}

</mosaic_0001>

<llo_original>
// kernel: tpu_custom_call.1
$region0: #{tpu_custom_call.1}
  #allocation0 [shape = 'u32[]', space=smem, size = 0x4, offset = 0x4, fixed_abs, tag = 'smem constant byte address 0x4 - core index']
  #allocation1 [shape = 'u32[144,128]{1,0:T(1,128)}', space=vmem, size = 0x12000, scoped, tag = 'internal scratch']
  %s0 = inlined_call_operand.vmem [shape: bf16[2,2,768], index: 0, kind: input, shape index: {}]
  %s1 = inlined_call_operand.vmem [shape: bf16[768,64], index: 1, kind: input, shape index: {}]
  %s2 = inlined_call_operand.vmem [shape: f32[1,64], index: 2, kind: input, shape index: {}]
  %s3 = inlined_call_operand.vmem [shape: bf16[64,4], index: 3, kind: input, shape index: {}]
  %s4 = inlined_call_operand.vmem [shape: f32[1,4], index: 4, kind: input, shape index: {}]
  %s5 = inlined_call_operand.vmem [shape: bf16[4,64], index: 5, kind: input, shape index: {}]
  %s6 = inlined_call_operand.vmem [shape: f32[1,64], index: 6, kind: input, shape index: {}]
  %s7 = inlined_call_operand.hbm [shape: f32[2,64], index: 7, kind: output, shape index: {0}]
  %s8 = inlined_call_operand.hbm [shape: f32[2,64], index: 8, kind: output, shape index: {1}]
  %s9 = inlined_call_operand.hbm [shape: f32[2,64], index: 9, kind: output, shape index: {2}]
  %10 = xla_tuple %s7, %s8, %s9
  %s11 = sld [smem:[#allocation0]]
  $region54: #{tpu_custom_call.1} parent=0
    _
  %s13 = ssub.s32 1, %s11
  %s14 = scalar_select 0, %s13, %s11
  $region1: #{tpu_custom_call.1} parent=0
    #allocation2 [shape = 'u8[1024]{0}', space=vmem, size = 0x400, scoped, tag = 'output window, operand 0, single buffered']
    #allocation3 [shape = 's32[1]{0}', space=sflag, size = 0x4, scoped, tag = 'scoped memory for tpu_custom_call.1']
    #allocation4 [shape = 'u8[1024]{0}', space=vmem, size = 0x400, scoped, tag = 'output window, operand 1, single buffered']
    #allocation5 [shape = 's32[1]{0}', space=sflag, size = 0x4, scoped, tag = 'scoped memory for tpu_custom_call.1']
    #allocation6 [shape = 'u8[1024]{0}', space=vmem, size = 0x400, scoped, tag = 'output window, operand 2, single buffered']
    %15 = vsyncpa [#allocation3], 0
    %16 = vsyncpa [#allocation5], 0
    // Predicated region
    $region2: #{tpu_custom_call.1} parent=1 // pred_check
      _
    $region3: #{tpu_custom_call.1} parent=1 // pred_check_branch
      %18 = sbr.rel (0) target = $region5
    $region4: #{tpu_custom_call.1} parent=1 // pred_region
      _
    $region5: #{tpu_custom_call.1} parent=1 // pred_fallthru
      _
    // Predicated region
    $region6: #{tpu_custom_call.1} parent=1 // pred_check
      _
    $region7: #{tpu_custom_call.1} parent=1 // pred_check_branch
      %20 = sbr.rel (0) target = $region9
    $region8: #{tpu_custom_call.1} parent=1 // pred_region
      _
    $region9: #{tpu_custom_call.1} parent=1 // pred_fallthru
      _
    // Predicated region
    $region10: #{tpu_custom_call.1} parent=1 // pred_check
      _
    $region11: #{tpu_custom_call.1} parent=1 // pred_check_branch
      %22 = sbr.rel (0) target = $region13
    $region12: #{tpu_custom_call.1} parent=1 // pred_region
      _
    $region13: #{tpu_custom_call.1} parent=1 // pred_fallthru
      _
    // Predicated region
    $region14: #{tpu_custom_call.1} parent=1 // pred_check
      _
    $region15: #{tpu_custom_call.1} parent=1 // pred_check_branch
      %24 = sbr.rel (0) target = $region17
    $region16: #{tpu_custom_call.1} parent=1 // pred_region
      _
    $region17: #{tpu_custom_call.1} parent=1 // pred_fallthru
      _
    // Predicated region
    $region18: #{tpu_custom_call.1} parent=1 // pred_check
      _
    $region19: #{tpu_custom_call.1} parent=1 // pred_check_branch
      %26 = sbr.rel (0) target = $region21
    $region20: #{tpu_custom_call.1} parent=1 // pred_region
      _
    $region21: #{tpu_custom_call.1} parent=1 // pred_fallthru
      _
    // Predicated region
    $region22: #{tpu_custom_call.1} parent=1 // pred_check
      _
    $region23: #{tpu_custom_call.1} parent=1 // pred_check_branch
      %28 = sbr.rel (0) target = $region25
    $region24: #{tpu_custom_call.1} parent=1 // pred_region
      _
    $region25: #{tpu_custom_call.1} parent=1 // pred_fallthru
      _
    // Predicated region
    $region26: #{tpu_custom_call.1} parent=1 // pred_check
      _
    $region27: #{tpu_custom_call.1} parent=1 // pred_check_branch
      %30 = sbr.rel (0) target = $region29
    $region28: #{tpu_custom_call.1} parent=1 // pred_region
      _
    $region29: #{tpu_custom_call.1} parent=1 // pred_fallthru
      _
    %v32 = vld [vmem:[%s0] sm:$0x3f]
    %v33 = vld [vmem:[%s0 + $0x6] sm:$0x3f]
    %v34 = vunpack.c.l.bf16 %v32
    %v35 = vunpack.c.h.bf16 %v32
    %v36 = vunpack.c.l.bf16 %v33
    %v37 = vunpack.c.h.bf16 %v33
    %v42 = vcombine.high %v34, %v34
    %v44 = vunpack.c.l.s4 1983009808
    %v45 = vunpack.c.0.s8 %v44
    %v46 = vlaneseq
    %v47 = vshrl.u32 %v46, 7
    %v48 = vsub.s32 %v45, %v47
    %v49 = vrot.slane %v34, %v48
    %v51 = vunpack.c.l.s4 1983009808
    %v52 = vunpack.c.0.s8 %v51
    %v53 = vlaneseq
    %v54 = vshrl.u32 %v53, 7
    %v55 = vsub.s32 %v52, %v54
    %v56 = vrot.slane %v42, %v55
    %v57 = vcombine.high %v49, %v49
    %v58 = vcombine.high %v56, %v56
    %v60 = vunpack.c.l.s4 1983009808
    %v61 = vunpack.c.0.s8 %v60
    %v62 = vlaneseq
    %v63 = vshrl.u32 %v62, 7
    %v64 = vsub.s32 %v61, %v63
    %v65 = vrot.slane %v35, %v64
    %v66 = vcombine.high %v65, %v65
    %v67 = vcombine.high %v36, %v36
    %v69 = vunpack.c.l.s4 1983009808
    %v70 = vunpack.c.0.s8 %v69
    %v71 = vlaneseq
    %v72 = vshrl.u32 %v71, 7
    %v73 = vsub.s32 %v70, %v72
    %v74 = vrot.slane %v36, %v73
    %v76 = vunpack.c.l.s4 1983009808
    %v77 = vunpack.c.0.s8 %v76
    %v78 = vlaneseq
    %v79 = vshrl.u32 %v78, 7
    %v80 = vsub.s32 %v77, %v79
    %v81 = vrot.slane %v67, %v80
    %v82 = vcombine.high %v74, %v74
    %v83 = vcombine.high %v81, %v81
    %v85 = vunpack.c.l.s4 1983009808
    %v86 = vunpack.c.0.s8 %v85
    %v87 = vlaneseq
    %v88 = vshrl.u32 %v87, 7
    %v89 = vsub.s32 %v86, %v88
    %v90 = vrot.slane %v37, %v89
    %v91 = vcombine.high %v90, %v90
    %vm104 = vcmask 1041408
    %v105 = vsel %vm104, %v49, 0.0
    %v106 = vrot.slane %v105, 4
    %v107 = vadd.f32 %v105, %v106
    %v108 = vrot.slane %v107, 2
    %v109 = vadd.f32 %v107, %v108
    %v110 = vrot.slane %v109, 1
    %v111 = vadd.f32 %v109, %v110
    %v112 = vsel %vm104, %v57, 0.0
    %v113 = vrot.slane %v112, 4
    %v114 = vadd.f32 %v112, %v113
    %v115 = vrot.slane %v114, 2
    %v116 = vadd.f32 %v114, %v115
    %v117 = vrot.slane %v116, 1
    %v118 = vadd.f32 %v116, %v117
    %v119 = vsel %vm104, %v56, 0.0
    %v120 = vrot.slane %v119, 4
    %v121 = vadd.f32 %v119, %v120
    %v122 = vrot.slane %v121, 2
    %v123 = vadd.f32 %v121, %v122
    %v124 = vrot.slane %v123, 1
    %v125 = vadd.f32 %v123, %v124
    %v126 = vsel %vm104, %v58, 0.0
    %v127 = vrot.slane %v126, 4
    %v128 = vadd.f32 %v126, %v127
    %v129 = vrot.slane %v128, 2
    %v130 = vadd.f32 %v128, %v129
    %v131 = vrot.slane %v130, 1
    %v132 = vadd.f32 %v130, %v131
    %v133 = vsel %vm104, %v65, 0.0
    %v134 = vrot.slane %v133, 4
    %v135 = vadd.f32 %v133, %v134
    %v136 = vrot.slane %v135, 2
    %v137 = vadd.f32 %v135, %v136
    %v138 = vrot.slane %v137, 1
    %v139 = vadd.f32 %v137, %v138
    %v140 = vsel %vm104, %v66, 0.0
    %v141 = vrot.slane %v140, 4
    %v142 = vadd.f32 %v140, %v141
    %v143 = vrot.slane %v142, 2
    %v144 = vadd.f32 %v142, %v143
    %v145 = vrot.slane %v144, 1
    %v146 = vadd.f32 %v144, %v145
    %v147 = vsel %vm104, %v74, 0.0
    %v148 = vrot.slane %v147, 4
    %v149 = vadd.f32 %v147, %v148
    %v150 = vrot.slane %v149, 2
    %v151 = vadd.f32 %v149, %v150
    %v152 = vrot.slane %v151, 1
    %v153 = vadd.f32 %v151, %v152
    %v154 = vsel %vm104, %v82, 0.0
    %v155 = vrot.slane %v154, 4
    %v156 = vadd.f32 %v154, %v155
    %v157 = vrot.slane %v156, 2
    %v158 = vadd.f32 %v156, %v157
    %v159 = vrot.slane %v158, 1
    %v160 = vadd.f32 %v158, %v159
    %v161 = vsel %vm104, %v81, 0.0
    %v162 = vrot.slane %v161, 4
    %v163 = vadd.f32 %v161, %v162
    %v164 = vrot.slane %v163, 2
    %v165 = vadd.f32 %v163, %v164
    %v166 = vrot.slane %v165, 1
    %v167 = vadd.f32 %v165, %v166
    %v168 = vsel %vm104, %v83, 0.0
    %v169 = vrot.slane %v168, 4
    %v170 = vadd.f32 %v168, %v169
    %v171 = vrot.slane %v170, 2
    %v172 = vadd.f32 %v170, %v171
    %v173 = vrot.slane %v172, 1
    %v174 = vadd.f32 %v172, %v173
    %v175 = vsel %vm104, %v90, 0.0
    %v176 = vrot.slane %v175, 4
    %v177 = vadd.f32 %v175, %v176
    %v178 = vrot.slane %v177, 2
    %v179 = vadd.f32 %v177, %v178
    %v180 = vrot.slane %v179, 1
    %v181 = vadd.f32 %v179, %v180
    %v182 = vsel %vm104, %v91, 0.0
    %v183 = vrot.slane %v182, 4
    %v184 = vadd.f32 %v182, %v183
    %v185 = vrot.slane %v184, 2
    %v186 = vadd.f32 %v184, %v185
    %v187 = vrot.slane %v186, 1
    %v188 = vadd.f32 %v186, %v187
    %v189 = vrcp.pop 2.0
    %v190 = vmul.f32 %v111, %v189
    %v191 = vmul.f32 %v118, %v189
    %v192 = vmul.f32 %v125, %v189
    %v193 = vmul.f32 %v132, %v189
    %v194 = vmul.f32 %v139, %v189
    %v195 = vmul.f32 %v146, %v189
    %v196 = vmul.f32 %v153, %v189
    %v197 = vmul.f32 %v160, %v189
    %v198 = vmul.f32 %v167, %v189
    %v199 = vmul.f32 %v174, %v189
    %v200 = vmul.f32 %v181, %v189
    %v201 = vmul.f32 %v188, %v189
    %v202 = vpack.c.bf16 %v190, %v190
    %v203 = vpack.c.bf16 %v191, %v191
    %v204 = vpack.c.bf16 %v192, %v192
    %v205 = vpack.c.bf16 %v193, %v193
    %v206 = vpack.c.bf16 %v194, %v194
    %v207 = vpack.c.bf16 %v195, %v195
    %v208 = vpack.c.bf16 %v196, %v196
    %v209 = vpack.c.bf16 %v197, %v197
    %v210 = vpack.c.bf16 %v198, %v198
    %v211 = vpack.c.bf16 %v199, %v199
    %v212 = vpack.c.bf16 %v200, %v200
    %v213 = vpack.c.bf16 %v201, %v201
    %v214 = vld [vmem:[%s1] sm:$0xf]
    %v215 = vld [vmem:[%s1 + $0x4] sm:$0xf]
    %v216 = vld [vmem:[%s1 + $0x8] sm:$0xf]
    %v217 = vld [vmem:[%s1 + $0xc] sm:$0xf]
    %v218 = vld [vmem:[%s1 + $0x10] sm:$0xf]
    %v219 = vld [vmem:[%s1 + $0x14] sm:$0xf]
    %v220 = vld [vmem:[%s1 + $0x18] sm:$0xf]
    %v221 = vld [vmem:[%s1 + $0x1c] sm:$0xf]
    %v222 = vld [vmem:[%s1 + $0x20] sm:$0xf]
    %v223 = vld [vmem:[%s1 + $0x24] sm:$0xf]
    %v224 = vld [vmem:[%s1 + $0x28] sm:$0xf]
    %v225 = vld [vmem:[%s1 + $0x2c] sm:$0xf]
    %v226 = vld [vmem:[%s1 + $0x30] sm:$0xf]
    %v227 = vld [vmem:[%s1 + $0x34] sm:$0xf]
    %v228 = vld [vmem:[%s1 + $0x38] sm:$0xf]
    %v229 = vld [vmem:[%s1 + $0x3c] sm:$0xf]
    %v230 = vld [vmem:[%s1 + $0x40] sm:$0xf]
    %v231 = vld [vmem:[%s1 + $0x44] sm:$0xf]
    %v232 = vld [vmem:[%s1 + $0x48] sm:$0xf]
    %v233 = vld [vmem:[%s1 + $0x4c] sm:$0xf]
    %v234 = vld [vmem:[%s1 + $0x50] sm:$0xf]
    %v235 = vld [vmem:[%s1 + $0x54] sm:$0xf]
    %v236 = vld [vmem:[%s1 + $0x58] sm:$0xf]
    %v237 = vld [vmem:[%s1 + $0x5c] sm:$0xf]
    %v238 = vld [vmem:[%s1 + $0x60] sm:$0xf]
    %v239 = vld [vmem:[%s1 + $0x64] sm:$0xf]
    %v240 = vld [vmem:[%s1 + $0x68] sm:$0xf]
    %v241 = vld [vmem:[%s1 + $0x6c] sm:$0xf]
    %v242 = vld [vmem:[%s1 + $0x70] sm:$0xf]
    %v243 = vld [vmem:[%s1 + $0x74] sm:$0xf]
    %v244 = vld [vmem:[%s1 + $0x78] sm:$0xf]
    %v245 = vld [vmem:[%s1 + $0x7c] sm:$0xf]
    %v246 = vld [vmem:[%s1 + $0x80] sm:$0xf]
    %v247 = vld [vmem:[%s1 + $0x84] sm:$0xf]
    %v248 = vld [vmem:[%s1 + $0x88] sm:$0xf]
    %v249 = vld [vmem:[%s1 + $0x8c] sm:$0xf]
    %v250 = vld [vmem:[%s1 + $0x90] sm:$0xf]
    %v251 = vld [vmem:[%s1 + $0x94] sm:$0xf]
    %v252 = vld [vmem:[%s1 + $0x98] sm:$0xf]
    %v253 = vld [vmem:[%s1 + $0x9c] sm:$0xf]
    %v254 = vld [vmem:[%s1 + $0xa0] sm:$0xf]
    %v255 = vld [vmem:[%s1 + $0xa4] sm:$0xf]
    %v256 = vld [vmem:[%s1 + $0xa8] sm:$0xf]
    %v257 = vld [vmem:[%s1 + $0xac] sm:$0xf]
    %v258 = vld [vmem:[%s1 + $0xb0] sm:$0xf]
    %v259 = vld [vmem:[%s1 + $0xb4] sm:$0xf]
    %v260 = vld [vmem:[%s1 + $0xb8] sm:$0xf]
    %v261 = vld [vmem:[%s1 + $0xbc] sm:$0xf]
    %v262 = vld [vmem:[%s1 + $0xc0] sm:$0xf]
    %v263 = vld [vmem:[%s1 + $0xc4] sm:$0xf]
    %v264 = vld [vmem:[%s1 + $0xc8] sm:$0xf]
    %v265 = vld [vmem:[%s1 + $0xcc] sm:$0xf]
    %v266 = vld [vmem:[%s1 + $0xd0] sm:$0xf]
    %v267 = vld [vmem:[%s1 + $0xd4] sm:$0xf]
    %v268 = vld [vmem:[%s1 + $0xd8] sm:$0xf]
    %v269 = vld [vmem:[%s1 + $0xdc] sm:$0xf]
    %v270 = vld [vmem:[%s1 + $0xe0] sm:$0xf]
    %v271 = vld [vmem:[%s1 + $0xe4] sm:$0xf]
    %v272 = vld [vmem:[%s1 + $0xe8] sm:$0xf]
    %v273 = vld [vmem:[%s1 + $0xec] sm:$0xf]
    %v274 = vld [vmem:[%s1 + $0xf0] sm:$0xf]
    %v275 = vld [vmem:[%s1 + $0xf4] sm:$0xf]
    %v276 = vld [vmem:[%s1 + $0xf8] sm:$0xf]
    %v277 = vld [vmem:[%s1 + $0xfc] sm:$0xf]
    %v278 = vld [vmem:[%s1 + $0x100] sm:$0xf]
    %v279 = vld [vmem:[%s1 + $0x104] sm:$0xf]
    %v280 = vld [vmem:[%s1 + $0x108] sm:$0xf]
    %v281 = vld [vmem:[%s1 + $0x10c] sm:$0xf]
    %v282 = vld [vmem:[%s1 + $0x110] sm:$0xf]
    %v283 = vld [vmem:[%s1 + $0x114] sm:$0xf]
    %v284 = vld [vmem:[%s1 + $0x118] sm:$0xf]
    %v285 = vld [vmem:[%s1 + $0x11c] sm:$0xf]
    %v286 = vld [vmem:[%s1 + $0x120] sm:$0xf]
    %v287 = vld [vmem:[%s1 + $0x124] sm:$0xf]
    %v288 = vld [vmem:[%s1 + $0x128] sm:$0xf]
    %v289 = vld [vmem:[%s1 + $0x12c] sm:$0xf]
    %v290 = vld [vmem:[%s1 + $0x130] sm:$0xf]
    %v291 = vld [vmem:[%s1 + $0x134] sm:$0xf]
    %v292 = vld [vmem:[%s1 + $0x138] sm:$0xf]
    %v293 = vld [vmem:[%s1 + $0x13c] sm:$0xf]
    %v294 = vld [vmem:[%s1 + $0x140] sm:$0xf]
    %v295 = vld [vmem:[%s1 + $0x144] sm:$0xf]
    %v296 = vld [vmem:[%s1 + $0x148] sm:$0xf]
    %v297 = vld [vmem:[%s1 + $0x14c] sm:$0xf]
    %v298 = vld [vmem:[%s1 + $0x150] sm:$0xf]
    %v299 = vld [vmem:[%s1 + $0x154] sm:$0xf]
    %v300 = vld [vmem:[%s1 + $0x158] sm:$0xf]
    %v301 = vld [vmem:[%s1 + $0x15c] sm:$0xf]
    %v302 = vld [vmem:[%s1 + $0x160] sm:$0xf]
    %v303 = vld [vmem:[%s1 + $0x164] sm:$0xf]
    %v304 = vld [vmem:[%s1 + $0x168] sm:$0xf]
    %v305 = vld [vmem:[%s1 + $0x16c] sm:$0xf]
    %v306 = vld [vmem:[%s1 + $0x170] sm:$0xf]
    %v307 = vld [vmem:[%s1 + $0x174] sm:$0xf]
    %v308 = vld [vmem:[%s1 + $0x178] sm:$0xf]
    %v309 = vld [vmem:[%s1 + $0x17c] sm:$0xf]
    %v310 = vld [vmem:[%s2] sm:$0x1]
    %v312 = vlaneseq
    %v313 = vshrl.u32 %v312, 7
    %v314 = vsub.s32 0, %v313
    %v315 = vrot.slane %v310, %v314
    %v329 = vunpack.c.l.b16 %v202
    %v330 = vunpack.c.l.b16 %v203
    %v331 = vunpack.c.l.b16 %v204
    %v332 = vunpack.c.l.b16 %v205
    %v333 = vunpack.c.l.b16 %v206
    %v334 = vunpack.c.l.b16 %v207
    %v335 = vunpack.c.l.b16 %v208
    %v336 = vunpack.c.l.b16 %v209
    %v337 = vunpack.c.l.b16 %v210
    %v338 = vunpack.c.l.b16 %v211
    %v339 = vunpack.c.l.b16 %v212
    %v340 = vunpack.c.l.b16 %v213
    %vm341 = vcmask 1041409
    %v342 = vsel %vm341, %v335, %v329
    %v343 = vsel %vm341, %v336, %v330
    %v344 = vsel %vm341, %v337, %v331
    %v345 = vsel %vm341, %v338, %v332
    %v346 = vsel %vm341, %v339, %v333
    %v347 = vsel %vm341, %v340, %v334
    %v348 = vpack.c.b16 %v342, %v342
    %v349 = vpack.c.b16 %v343, %v343
    %v350 = vpack.c.b16 %v344, %v344
    %v351 = vpack.c.b16 %v345, %v345
    %v352 = vpack.c.b16 %v346, %v346
    %v353 = vpack.c.b16 %v347, %v347
    %v456 = vunpack.c.l.b16 %v214
    %v457 = vunpack.c.l.b16 %v215
    %v458 = vunpack.c.l.b16 %v216
    %v459 = vunpack.c.l.b16 %v217
    %v460 = vunpack.c.l.b16 %v218
    %v461 = vunpack.c.l.b16 %v219
    %v462 = vunpack.c.l.b16 %v220
    %v463 = vunpack.c.l.b16 %v221
    %v464 = vunpack.c.l.b16 %v222
    %v465 = vunpack.c.l.b16 %v223
    %v466 = vunpack.c.l.b16 %v224
    %v467 = vunpack.c.l.b16 %v225
    %v468 = vunpack.c.l.b16 %v226
    %v469 = vunpack.c.l.b16 %v227
    %v470 = vunpack.c.l.b16 %v228
    %v471 = vunpack.c.l.b16 %v229
    %v472 = vunpack.c.l.b16 %v230
    %v473 = vunpack.c.l.b16 %v231
    %v474 = vunpack.c.l.b16 %v232
    %v475 = vunpack.c.l.b16 %v233
    %v476 = vunpack.c.l.b16 %v234
    %v477 = vunpack.c.l.b16 %v235
    %v478 = vunpack.c.l.b16 %v236
    %v479 = vunpack.c.l.b16 %v237
    %v480 = vunpack.c.l.b16 %v238
    %v481 = vunpack.c.l.b16 %v239
    %v482 = vunpack.c.l.b16 %v240
    %v483 = vunpack.c.l.b16 %v241
    %v484 = vunpack.c.l.b16 %v242
    %v485 = vunpack.c.l.b16 %v243
    %v486 = vunpack.c.l.b16 %v244
    %v487 = vunpack.c.l.b16 %v245
    %v488 = vunpack.c.l.b16 %v246
    %v489 = vunpack.c.l.b16 %v247
    %v490 = vunpack.c.l.b16 %v248
    %v491 = vunpack.c.l.b16 %v249
    %v492 = vunpack.c.l.b16 %v250
    %v493 = vunpack.c.l.b16 %v251
    %v494 = vunpack.c.l.b16 %v252
    %v495 = vunpack.c.l.b16 %v253
    %v496 = vunpack.c.l.b16 %v254
    %v497 = vunpack.c.l.b16 %v255
    %v498 = vunpack.c.l.b16 %v256
    %v499 = vunpack.c.l.b16 %v257
    %v500 = vunpack.c.l.b16 %v258
    %v501 = vunpack.c.l.b16 %v259
    %v502 = vunpack.c.l.b16 %v260
    %v503 = vunpack.c.l.b16 %v261
    %v504 = vunpack.c.l.b16 %v262
    %v505 = vunpack.c.l.b16 %v263
    %v506 = vunpack.c.l.b16 %v264
    %v507 = vunpack.c.l.b16 %v265
    %v508 = vunpack.c.l.b16 %v266
    %v509 = vunpack.c.l.b16 %v267
    %v510 = vunpack.c.l.b16 %v268
    %v511 = vunpack.c.l.b16 %v269
    %v512 = vunpack.c.l.b16 %v270
    %v513 = vunpack.c.l.b16 %v271
    %v514 = vunpack.c.l.b16 %v272
    %v515 = vunpack.c.l.b16 %v273
    %v516 = vunpack.c.l.b16 %v274
    %v517 = vunpack.c.l.b16 %v275
    %v518 = vunpack.c.l.b16 %v276
    %v519 = vunpack.c.l.b16 %v277
    %v520 = vunpack.c.l.b16 %v278
    %v521 = vunpack.c.l.b16 %v279
    %v522 = vunpack.c.l.b16 %v280
    %v523 = vunpack.c.l.b16 %v281
    %v524 = vunpack.c.l.b16 %v282
    %v525 = vunpack.c.l.b16 %v283
    %v526 = vunpack.c.l.b16 %v284
    %v527 = vunpack.c.l.b16 %v285
    %v528 = vunpack.c.l.b16 %v286
    %v529 = vunpack.c.l.b16 %v287
    %v530 = vunpack.c.l.b16 %v288
    %v531 = vunpack.c.l.b16 %v289
    %v532 = vunpack.c.l.b16 %v290
    %v533 = vunpack.c.l.b16 %v291
    %v534 = vunpack.c.l.b16 %v292
    %v535 = vunpack.c.l.b16 %v293
    %v536 = vunpack.c.l.b16 %v294
    %v537 = vunpack.c.l.b16 %v295
    %v538 = vunpack.c.l.b16 %v296
    %v539 = vunpack.c.l.b16 %v297
    %v540 = vunpack.c.l.b16 %v298
    %v541 = vunpack.c.l.b16 %v299
    %v542 = vunpack.c.l.b16 %v300
    %v543 = vunpack.c.l.b16 %v301
    %v544 = vunpack.c.l.b16 %v302
    %v545 = vunpack.c.l.b16 %v303
    %v546 = vunpack.c.l.b16 %v304
    %v547 = vunpack.c.l.b16 %v305
    %v548 = vunpack.c.l.b16 %v306
    %v549 = vunpack.c.l.b16 %v307
    %v550 = vunpack.c.l.b16 %v308
    %v551 = vunpack.c.l.b16 %v309
    %v552 = vpack.c.b16 %v457, %v456
    %v553 = vpack.c.b16 %v459, %v458
    %v554 = vpack.c.b16 %v461, %v460
    %v555 = vpack.c.b16 %v463, %v462
    %v556 = vpack.c.b16 %v465, %v464
    %v557 = vpack.c.b16 %v467, %v466
    %v558 = vpack.c.b16 %v469, %v468
    %v559 = vpack.c.b16 %v471, %v470
    %v560 = vpack.c.b16 %v473, %v472
    %v561 = vpack.c.b16 %v475, %v474
    %v562 = vpack.c.b16 %v477, %v476
    %v563 = vpack.c.b16 %v479, %v478
    %v564 = vpack.c.b16 %v481, %v480
    %v565 = vpack.c.b16 %v483, %v482
    %v566 = vpack.c.b16 %v485, %v484
    %v567 = vpack.c.b16 %v487, %v486
    %v568 = vpack.c.b16 %v489, %v488
    %v569 = vpack.c.b16 %v491, %v490
    %v570 = vpack.c.b16 %v493, %v492
    %v571 = vpack.c.b16 %v495, %v494
    %v572 = vpack.c.b16 %v497, %v496
    %v573 = vpack.c.b16 %v499, %v498
    %v574 = vpack.c.b16 %v501, %v500
    %v575 = vpack.c.b16 %v503, %v502
    %v576 = vpack.c.b16 %v505, %v504
    %v577 = vpack.c.b16 %v507, %v506
    %v578 = vpack.c.b16 %v509, %v508
    %v579 = vpack.c.b16 %v511, %v510
    %v580 = vpack.c.b16 %v513, %v512
    %v581 = vpack.c.b16 %v515, %v514
    %v582 = vpack.c.b16 %v517, %v516
    %v583 = vpack.c.b16 %v519, %v518
    %v584 = vpack.c.b16 %v521, %v520
    %v585 = vpack.c.b16 %v523, %v522
    %v586 = vpack.c.b16 %v525, %v524
    %v587 = vpack.c.b16 %v527, %v526
    %v588 = vpack.c.b16 %v529, %v528
    %v589 = vpack.c.b16 %v531, %v530
    %v590 = vpack.c.b16 %v533, %v532
    %v591 = vpack.c.b16 %v535, %v534
    %v592 = vpack.c.b16 %v537, %v536
    %v593 = vpack.c.b16 %v539, %v538
    %v594 = vpack.c.b16 %v541, %v540
    %v595 = vpack.c.b16 %v543, %v542
    %v596 = vpack.c.b16 %v545, %v544
    %v597 = vpack.c.b16 %v547, %v546
    %v598 = vpack.c.b16 %v549, %v548
    %v599 = vpack.c.b16 %v551, %v550
    %648 = vmatprep.subr.bf16.mxu0 0
    %649 = vmatpush1.bf16.msra.mxu0 %v552
    %650 = vmatprep.subr.bf16.mxu0 0
    %651 = vmatpush1.bf16.msra.mxu0 %v553
    %652 = vmatprep.subr.bf16.mxu0 0
    %653 = vmatpush1.bf16.msra.mxu0 %v554
    %654 = vmatprep.subr.bf16.mxu0 0
    %655 = vmatpush1.bf16.msra.mxu0 %v555
    %656 = vmatprep.subr.bf16.mxu0 0
    %657 = vmatpush1.bf16.msra.mxu0 %v556
    %658 = vmatprep.subr.bf16.mxu0 0
    %659 = vmatpush1.bf16.msra.mxu0 %v557
    %660 = vmatprep.subr.bf16.mxu0 0
    %661 = vmatpush1.bf16.msra.mxu0 %v558
    %662 = vmatprep.subr.bf16.mxu0 0
    %663 = vmatpush1.bf16.msra.mxu0 %v559
    %664 = vmatprep.subr.bf16.mxu0 0
    %665 = vmatpush1.bf16.msra.mxu0 %v560
    %666 = vmatprep.subr.bf16.mxu0 0
    %667 = vmatpush1.bf16.msra.mxu0 %v561
    %668 = vmatprep.subr.bf16.mxu0 0
    %669 = vmatpush1.bf16.msra.mxu0 %v562
    %670 = vmatprep.subr.bf16.mxu0 0
    %671 = vmatpush1.bf16.msra.mxu0 %v563
    %672 = vmatprep.subr.bf16.mxu0 0
    %673 = vmatpush1.bf16.msra.mxu0 %v564
    %674 = vmatprep.subr.bf16.mxu0 0
    %675 = vmatpush1.bf16.msra.mxu0 %v565
    %676 = vmatprep.subr.bf16.mxu0 0
    %677 = vmatpush1.bf16.msra.mxu0 %v566
    %678 = vmatprep.subr.bf16.mxu0 0
    %679 = vmatpush1.bf16.msra.mxu0 %v567
    %680 = vmatprep.mubr.bf16.mxu0 %v349
    %681 = vmatmul.mubr.bf16.gmra.mrb[0].mxu0 %v348
    %v682 = vpop.f32.mrb[0].mxu0
    %v683 = vadd.f32 %v315, %v682
    %v684 = vpop.f32.mrb[0].mxu0
    %v685 = vpop.f32.mrb[0].mxu0
    %v686 = vpop.f32.mrb[0].mxu0
    %687 = vdwg.mxu0
    %688 = vmatprep.subr.bf16.mxu0 0
    %689 = vmatpush1.bf16.msra.mxu0 %v568
    %690 = vmatprep.subr.bf16.mxu0 0
    %691 = vmatpush1.bf16.msra.mxu0 %v569
    %692 = vmatprep.subr.bf16.mxu0 0
    %693 = vmatpush1.bf16.msra.mxu0 %v570
    %694 = vmatprep.subr.bf16.mxu0 0
    %695 = vmatpush1.bf16.msra.mxu0 %v571
    %696 = vmatprep.subr.bf16.mxu0 0
    %697 = vmatpush1.bf16.msra.mxu0 %v572
    %698 = vmatprep.subr.bf16.mxu0 0
    %699 = vmatpush1.bf16.msra.mxu0 %v573
    %700 = vmatprep.subr.bf16.mxu0 0
    %701 = vmatpush1.bf16.msra.mxu0 %v574
    %702 = vmatprep.subr.bf16.mxu0 0
    %703 = vmatpush1.bf16.msra.mxu0 %v575
    %704 = vmatprep.subr.bf16.mxu0 0
    %705 = vmatpush1.bf16.msra.mxu0 %v576
    %706 = vmatprep.subr.bf16.mxu0 0
    %707 = vmatpush1.bf16.msra.mxu0 %v577
    %708 = vmatprep.subr.bf16.mxu0 0
    %709 = vmatpush1.bf16.msra.mxu0 %v578
    %710 = vmatprep.subr.bf16.mxu0 0
    %711 = vmatpush1.bf16.msra.mxu0 %v579
    %712 = vmatprep.subr.bf16.mxu0 0
    %713 = vmatpush1.bf16.msra.mxu0 %v580
    %714 = vmatprep.subr.bf16.mxu0 0
    %715 = vmatpush1.bf16.msra.mxu0 %v581
    %716 = vmatprep.subr.bf16.mxu0 0
    %717 = vmatpush1.bf16.msra.mxu0 %v582
    %718 = vmatprep.subr.bf16.mxu0 0
    %719 = vmatpush1.bf16.msra.mxu0 %v583
    %720 = vmatprep.mubr.bf16.mxu0 %v351
    %721 = vmatmul.mubr.bf16.gmra.mrb[0].mxu0 %v350
    %v722 = vpop.f32.mrb[0].mxu0
    %v723 = vadd.f32 %v683, %v722
    %v724 = vpop.f32.mrb[0].mxu0
    %v725 = vpop.f32.mrb[0].mxu0
    %v726 = vpop.f32.mrb[0].mxu0
    %727 = vdwg.mxu0
    %728 = vmatprep.subr.bf16.mxu0 0
    %729 = vmatpush1.bf16.msra.mxu0 %v584
    %730 = vmatprep.subr.bf16.mxu0 0
    %731 = vmatpush1.bf16.msra.mxu0 %v585
    %732 = vmatprep.subr.bf16.mxu0 0
    %733 = vmatpush1.bf16.msra.mxu0 %v586
    %734 = vmatprep.subr.bf16.mxu0 0
    %735 = vmatpush1.bf16.msra.mxu0 %v587
    %736 = vmatprep.subr.bf16.mxu0 0
    %737 = vmatpush1.bf16.msra.mxu0 %v588
    %738 = vmatprep.subr.bf16.mxu0 0
    %739 = vmatpush1.bf16.msra.mxu0 %v589
    %740 = vmatprep.subr.bf16.mxu0 0
    %741 = vmatpush1.bf16.msra.mxu0 %v590
    %742 = vmatprep.subr.bf16.mxu0 0
    %743 = vmatpush1.bf16.msra.mxu0 %v591
    %744 = vmatprep.subr.bf16.mxu0 0
    %745 = vmatpush1.bf16.msra.mxu0 %v592
    %746 = vmatprep.subr.bf16.mxu0 0
    %747 = vmatpush1.bf16.msra.mxu0 %v593
    %748 = vmatprep.subr.bf16.mxu0 0
    %749 = vmatpush1.bf16.msra.mxu0 %v594
    %750 = vmatprep.subr.bf16.mxu0 0
    %751 = vmatpush1.bf16.msra.mxu0 %v595
    %752 = vmatprep.subr.bf16.mxu0 0
    %753 = vmatpush1.bf16.msra.mxu0 %v596
    %754 = vmatprep.subr.bf16.mxu0 0
    %755 = vmatpush1.bf16.msra.mxu0 %v597
    %756 = vmatprep.subr.bf16.mxu0 0
    %757 = vmatpush1.bf16.msra.mxu0 %v598
    %758 = vmatprep.subr.bf16.mxu0 0
    %759 = vmatpush1.bf16.msra.mxu0 %v599
    %760 = vmatprep.mubr.bf16.mxu0 %v353
    %761 = vmatmul.mubr.bf16.gmra.mrb[0].mxu0 %v352
    %v762 = vpop.f32.mrb[0].mxu0
    %v763 = vadd.f32 %v723, %v762
    %v764 = vpop.f32.mrb[0].mxu0
    %v765 = vpop.f32.mrb[0].mxu0
    %v766 = vpop.f32.mrb[0].mxu0
    %767 = vdwg.mxu0
    %vm768 = vcmask 517120
    %769 = vst.msk [vmem:[#allocation2] sm:$0x3] %vm768, %v763
    %v770 = vmul.f32 %v763, %v763
    %v771 = vsel %vm768, %v770, 0.0
    %772 = vadd.xlane.f32.xlu0 %v771
    %v773 = vpop.xlane.xlu0 %772
    %v774 = vadd.f32 %v773, 1e-12
    %v775 = vrsqrt.pop %v774
    %v776 = vmul.f32 %v763, %v775
    %777 = vst.msk [vmem:[#allocation4] sm:$0x3] %vm768, %v776
    %v778 = vpack.c.bf16 %v776, %v776
    %v779 = vld [vmem:[%s3] sm:$0xf]
    %v780 = vld [vmem:[%s3 + $0x4] sm:$0xf]
    %v781 = vld [vmem:[%s3 + $0x8] sm:$0xf]
    %v782 = vld [vmem:[%s3 + $0xc] sm:$0xf]
    %v783 = vld [vmem:[%s3 + $0x10] sm:$0xf]
    %v784 = vld [vmem:[%s3 + $0x14] sm:$0xf]
    %v785 = vld [vmem:[%s3 + $0x18] sm:$0xf]
    %v786 = vld [vmem:[%s3 + $0x1c] sm:$0xf]
    %v787 = vld [vmem:[%s4] sm:$0x1]
    %v789 = vlaneseq
    %v790 = vshrl.u32 %v789, 7
    %v791 = vsub.s32 0, %v790
    %v792 = vrot.slane %v787, %v791
    %v802 = vunpack.c.l.b16 %v779
    %v803 = vunpack.c.l.b16 %v780
    %v804 = vunpack.c.l.b16 %v781
    %v805 = vunpack.c.l.b16 %v782
    %v806 = vunpack.c.l.b16 %v783
    %v807 = vunpack.c.l.b16 %v784
    %v808 = vunpack.c.l.b16 %v785
    %v809 = vunpack.c.l.b16 %v786
    %v810 = vpack.c.b16 %v803, %v802
    %v811 = vpack.c.b16 %v805, %v804
    %v812 = vpack.c.b16 %v807, %v806
    %v813 = vpack.c.b16 %v809, %v808
    %vm818 = vcmask 523264
    %v820 = vsel %vm818, %v778, 0
    %822 = vmatprep.subr.bf16.mxu0 0
    %823 = vmatpush1.bf16.msra.mxu0 %v810
    %824 = vmatprep.subr.bf16.mxu0 0
    %825 = vmatpush1.bf16.msra.mxu0 %v811
    %826 = vmatprep.subr.bf16.mxu0 0
    %827 = vmatpush1.bf16.msra.mxu0 %v812
    %828 = vmatprep.subr.bf16.mxu0 0
    %829 = vmatpush1.bf16.msra.mxu0 %v813
    %830 = vmatprep.subr.bf16.mxu0 0
    %831 = vmatpush1.bf16.msra.mxu0 0
    %832 = vmatprep.subr.bf16.mxu0 0
    %833 = vmatpush1.bf16.msra.mxu0 0
    %834 = vmatprep.subr.bf16.mxu0 0
    %835 = vmatpush1.bf16.msra.mxu0 0
    %836 = vmatprep.subr.bf16.mxu0 0
    %837 = vmatpush1.bf16.msra.mxu0 0
    %838 = vmatprep.subr.bf16.mxu0 0
    %839 = vmatpush1.bf16.msra.mxu0 0
    %840 = vmatprep.subr.bf16.mxu0 0
    %841 = vmatpush1.bf16.msra.mxu0 0
    %842 = vmatprep.subr.bf16.mxu0 0
    %843 = vmatpush1.bf16.msra.mxu0 0
    %844 = vmatprep.subr.bf16.mxu0 0
    %845 = vmatpush1.bf16.msra.mxu0 0
    %846 = vmatprep.subr.bf16.mxu0 0
    %847 = vmatpush1.bf16.msra.mxu0 0
    %848 = vmatprep.subr.bf16.mxu0 0
    %849 = vmatpush1.bf16.msra.mxu0 0
    %850 = vmatprep.subr.bf16.mxu0 0
    %851 = vmatpush1.bf16.msra.mxu0 0
    %852 = vmatprep.subr.bf16.mxu0 0
    %853 = vmatpush1.bf16.msra.mxu0 0
    %854 = vmatprep.mubr.bf16.mxu0 0
    %855 = vmatmul.mubr.bf16.gmra.mrb[0].mxu0 %v820
    %v856 = vpop.f32.mrb[0].mxu0
    %v857 = vadd.f32 %v792, %v856
    %v858 = vpop.f32.mrb[0].mxu0
    %v859 = vpop.f32.mrb[0].mxu0
    %v860 = vpop.f32.mrb[0].mxu0
    %861 = vdwg.mxu0
    %v862 = vmax.f32 %v857, 0.0
    %v863 = vpack.c.bf16 %v862, %v862
    %v864 = vld [vmem:[%s5] sm:$0x3]
    %v865 = vld [vmem:[%s6] sm:$0x1]
    %v867 = vlaneseq
    %v868 = vshrl.u32 %v867, 7
    %v869 = vsub.s32 0, %v868
    %v870 = vrot.slane %v865, %v869
    %vm872 = vcmask 31744
    %v874 = vsel %vm872, %v863, 0
    %v877 = vsel %vm104, %v864, 0
    %879 = vmatprep.subr.bf16.mxu0 0
    %880 = vmatpush1.bf16.msra.mxu0 %v877
    %881 = vmatprep.subr.bf16.mxu0 0
    %882 = vmatpush1.bf16.msra.mxu0 0
    %883 = vmatprep.subr.bf16.mxu0 0
    %884 = vmatpush1.bf16.msra.mxu0 0
    %885 = vmatprep.subr.bf16.mxu0 0
    %886 = vmatpush1.bf16.msra.mxu0 0
    %887 = vmatprep.subr.bf16.mxu0 0
    %888 = vmatpush1.bf16.msra.mxu0 0
    %889 = vmatprep.subr.bf16.mxu0 0
    %890 = vmatpush1.bf16.msra.mxu0 0
    %891 = vmatprep.subr.bf16.mxu0 0
    %892 = vmatpush1.bf16.msra.mxu0 0
    %893 = vmatprep.subr.bf16.mxu0 0
    %894 = vmatpush1.bf16.msra.mxu0 0
    %895 = vmatprep.subr.bf16.mxu0 0
    %896 = vmatpush1.bf16.msra.mxu0 0
    %897 = vmatprep.subr.bf16.mxu0 0
    %898 = vmatpush1.bf16.msra.mxu0 0
    %899 = vmatprep.subr.bf16.mxu0 0
    %900 = vmatpush1.bf16.msra.mxu0 0
    %901 = vmatprep.subr.bf16.mxu0 0
    %902 = vmatpush1.bf16.msra.mxu0 0
    %903 = vmatprep.subr.bf16.mxu0 0
    %904 = vmatpush1.bf16.msra.mxu0 0
    %905 = vmatprep.subr.bf16.mxu0 0
    %906 = vmatpush1.bf16.msra.mxu0 0
    %907 = vmatprep.subr.bf16.mxu0 0
    %908 = vmatpush1.bf16.msra.mxu0 0
    %909 = vmatprep.subr.bf16.mxu0 0
    %910 = vmatpush1.bf16.msra.mxu0 0
    %911 = vmatprep.mubr.bf16.mxu0 0
    %912 = vmatmul.mubr.bf16.gmra.mrb[0].mxu0 %v874
    %v913 = vpop.f32.mrb[0].mxu0
    %v914 = vadd.f32 %v870, %v913
    %v915 = vpop.f32.mrb[0].mxu0
    %v916 = vpop.f32.mrb[0].mxu0
    %v917 = vpop.f32.mrb[0].mxu0
    %918 = vdwg.mxu0
    %919 = vst.msk [vmem:[#allocation6] sm:$0x3] %vm768, %v914
    // Predicated region
    $region30: #{tpu_custom_call.1} parent=1 // pred_check
      _
    $region31: #{tpu_custom_call.1} parent=1 // pred_check_branch
      %921 = sbr.rel (0) target = $region33
    $region32: #{tpu_custom_call.1} parent=1 // pred_region
      %s923 = ssub.s32 32, 32
      %924 = vsyncadd [#allocation3], %s923
      %s926 = sshll.u32 [#allocation2], 4
      %s927 = int_to_ptr.vmem [resolvable:$true] %s926
      %929 = dma.vmem_to_hbm [thread:$0]  %s927, 32, %s7, [#allocation3]
    $region33: #{tpu_custom_call.1} parent=1 // pred_fallthru
      _
    // Predicated region
    $region34: #{tpu_custom_call.1} parent=1 // pred_check
      _
    $region35: #{tpu_custom_call.1} parent=1 // pred_check_branch
      %931 = sbr.rel (0) target = $region37
    $region36: #{tpu_custom_call.1} parent=1 // pred_region
      %s933 = ssub.s32 32, 32
      %934 = vsyncadd [#allocation5], %s933
      %s936 = sshll.u32 [#allocation4], 4
      %s937 = int_to_ptr.vmem [resolvable:$true] %s936
      %939 = dma.vmem_to_hbm [thread:$0]  %s937, 32, %s8, [#allocation5]
    $region37: #{tpu_custom_call.1} parent=1 // pred_fallthru
      _
    // Predicated region
    $region38: #{tpu_custom_call.1} parent=1 // pred_check
      _
    $region39: #{tpu_custom_call.1} parent=1 // pred_check_branch
      %941 = sbr.rel (0) target = $region41
    $region40: #{tpu_custom_call.1} parent=1 // pred_region
      %s943 = ssub.s32 32, 32
      %944 = vsyncadd [#allocation5], %s943
      %s946 = sshll.u32 [#allocation6], 4
      %s947 = int_to_ptr.vmem [resolvable:$true] %s946
      %949 = dma.vmem_to_hbm [thread:$0]  %s947, 32, %s9, [#allocation5]
    $region41: #{tpu_custom_call.1} parent=1 // pred_fallthru
      _
    // Predicated region
    $region42: #{tpu_custom_call.1} parent=1 // pred_check
      _
    $region43: #{tpu_custom_call.1} parent=1 // pred_check_branch
      %951 = sbr.rel (0) target = $region45
    $region44: #{tpu_custom_call.1} parent=1 // pred_region
      %952 = dma.done [#allocation3], 32
    $region45: #{tpu_custom_call.1} parent=1 // pred_fallthru
      _
    // Predicated region
    $region46: #{tpu_custom_call.1} parent=1 // pred_check
      _
    $region47: #{tpu_custom_call.1} parent=1 // pred_check_branch
      %954 = sbr.rel (0) target = $region49
    $region48: #{tpu_custom_call.1} parent=1 // pred_region
      %955 = dma.done [#allocation5], 32
    $region49: #{tpu_custom_call.1} parent=1 // pred_fallthru
      _
    // Predicated region
    $region50: #{tpu_custom_call.1} parent=1 // pred_check
      _
    $region51: #{tpu_custom_call.1} parent=1 // pred_check_branch
      %957 = sbr.rel (0) target = $region53
    $region52: #{tpu_custom_call.1} parent=1 // pred_region
      %958 = dma.done [#allocation5], 32
    $region53: #{tpu_custom_call.1} parent=1 // pred_fallthru
      _
    %959 = vsyncpa [#allocation3], 1
    %960 = vsyncpa [#allocation5], 1

</llo_original>
